<compile_context>
chip_gen: v7x
topology: tpu7x:2x2x1
jax: 0.10.0
libtpu: 0.0.40
codegen_flags: <defaults>
</compile_context>

<pallas_src>
import jax
import jax.numpy as jnp
from jax import lax
from jax.experimental import pallas as pl
from jax.experimental.pallas import tpu as pltpu


def _round_up(x, m):
    return (x + m - 1) // m * m


def _linreg_kernel(x_ref, w_ref, b_ref, o_ref):
    # x_ref: (bt, C*L)       input block (f32 or bf16), VMEM
    # w_ref: (C*L, N_pad)    folded conv weights, lane-padded, VMEM (single-buffered)
    # b_ref: (1, N_pad)      bias per output column (f32), VMEM (single-buffered)
    # o_ref: (bt, N_pad)     flattened output block, 128-dense lanes -> unmasked store
    acc = jnp.dot(x_ref[...], w_ref[...], preferred_element_type=jnp.float32)
    o_ref[...] = (acc + b_ref[...]).astype(o_ref.dtype)


def _fold_conv_weights(w, b, L, padding):
    """Fold Conv1d weights (O, C, K) + bias (O,) into a dense (C*L, O*L_out) matrix
    and a (1, O*L_out) bias row.  Input zero-padding is absorbed here and the column
    order (o*L_out + t) matches PyTorch's (B, O, L_out).view(B, -1)."""
    O, C, K = w.shape
    Lp = L + 2 * padding
    L_out = Lp - K + 1
    w_t = jnp.transpose(w, (1, 2, 0))                         # (C, K, O)
    cols = []
    for t in range(L_out):
        s = t - padding                                        # window shift vs x
        blk = jnp.zeros((C, L, O), w.dtype)
        j_lo, j_hi = max(0, s), min(L, K + s)
        if j_hi > j_lo:
            blk = blk.at[:, j_lo:j_hi, :].set(w_t[:, j_lo - s:j_hi - s, :])
        cols.append(blk)
    w_big = jnp.stack(cols, axis=-1).reshape(C * L, O * L_out)  # (C*L, O*L_out)
    b_big = jnp.repeat(b, L_out).reshape(1, O * L_out)          # bias[o*L_out+t]=b[o]
    return w_big, b_big, L_out


def _pick_batch_tile(B, k_dim, n_pad, x_itemsize, vmem_budget=26 << 20):
    """Largest multiple-of-8 batch tile that fits the VMEM budget; >=2 blocks for B>=16."""
    const_bytes = k_dim * n_pad * x_itemsize + n_pad * 4         # single-buffered W + bias
    avail = max(vmem_budget - const_bytes, 1 << 20)
    per_row = 2 * k_dim * x_itemsize + 2 * n_pad * 4             # 2x-buffered x + out rows
    bt = max(8, min(2048, (avail // per_row) // 8 * 8))
    b8 = _round_up(B, 8)
    if b8 >= 16:
        # keep at least 2 grid blocks so v7x's two TensorCores both get work
        bt = min(bt, _round_up(b8 // 2, 8))
    bt = max(8, min(bt, b8) // 8 * 8)
    return bt


def cnn_forward(x, w, b, padding=1, use_bf16=False):
    """x: (B, C, L); w: (O, C, K); b: (O,). Returns (B, O * L_out) == conv1d(x).view(B,-1)."""
    B, C, L = x.shape
    O, _, K = w.shape
    assert K <= L + 2 * padding, "kernel larger than padded input"

    # One-time weight folding (wrapper-side parameter preprocessing; cacheable).
    w_big, b_big, L_out = _fold_conv_weights(w, b, L, padding)
    N = O * L_out
    k_dim = C * L

    # Lane-dense output: pad N up to a multiple of 128 (zeros in W and bias).
    N_pad = max(128, _round_up(N, 128))
    if N_pad > N:
        w_big = jnp.pad(w_big, ((0, 0), (0, N_pad - N)))
        b_big = jnp.pad(b_big, ((0, 0), (0, N_pad - N)))

    compute_dtype = jnp.bfloat16 if use_bf16 else jnp.float32
    x_itemsize = jnp.dtype(compute_dtype).itemsize

    # Contiguous dim-collapse reshape: no data movement.
    x_flat = x.reshape(B, k_dim).astype(compute_dtype)
    w_big = w_big.astype(compute_dtype)
    b_big = b_big.astype(jnp.float32)

    # VMEM-budget-driven batch tile + batch padding for arbitrary B.
    bt = _pick_batch_tile(B, k_dim, N_pad, x_itemsize)
    B_pad = _round_up(B, bt)
    if B_pad > B:
        x_flat = jnp.pad(x_flat, ((0, B_pad - B), (0, 0)))
    grid = (B_pad // bt,)

    const_bytes = k_dim * N_pad * x_itemsize + N_pad * 4
    block_bytes = 2 * bt * (k_dim * x_itemsize + N_pad * 4)
    vmem_limit = int(min(max(const_bytes + block_bytes + (4 << 20), 16 << 20), 48 << 20))

    cost = pl.CostEstimate(
        flops=2 * B_pad * k_dim * N_pad,
        transcendentals=0,
        bytes_accessed=(B_pad * k_dim * x_itemsize          # x
                        + k_dim * N_pad * x_itemsize        # folded weights
                        + N_pad * 4                         # bias
                        + B_pad * N_pad * 4),               # out
    )

    out = pl.pallas_call(
        _linreg_kernel,
        out_shape=jax.ShapeDtypeStruct((B_pad, N_pad), jnp.float32),
        grid_spec=pltpu.PrefetchScalarGridSpec(
            num_scalar_prefetch=0,
            grid=grid,
            in_specs=[
                pl.BlockSpec((bt, k_dim), lambda i: (i, 0)),
                # Constant index_map -> fetched once; single buffer saves VMEM.
                pl.BlockSpec((k_dim, N_pad), lambda i: (0, 0),
                             pipeline_mode=pl.Buffered(1)),
                pl.BlockSpec((1, N_pad), lambda i: (0, 0),
                             pipeline_mode=pl.Buffered(1)),
            ],
            out_specs=pl.BlockSpec((bt, N_pad), lambda i: (i, 0)),
        ),
        compiler_params=pltpu.CompilerParams(
            dimension_semantics=("parallel",),
            vmem_limit_bytes=vmem_limit,
        ),
        cost_estimate=cost,
    )(x_flat, w_big, b_big)

    # Strip batch padding and lane padding; order already matches .view(B, -1).
    return out[:B, :N]


def _reference(x, w, b, padding=1):
    # Plain-JAX reference using lax conv (NCL layout == "NCH"/"OIH").
    out = lax.conv_general_dilated(
        x, w, window_strides=(1,), padding=[(padding, padding)],
        dimension_numbers=("NCH", "OIH", "NCH"),
    )
    out = out + b.reshape(1, -1, 1)
    return out.reshape(x.shape[0], -1)


if __name__ == "__main__":
    # Small shapes consistent with the module: kernel_size == input length,
    # padding=1 -> L_out = 3, output = (B, output_size * 3).
    B, C, L = 2, 4, 16       # batch, in_channels, length
    O, K = 5, 16             # output_size, kernel_size (= input_size)

    key = jax.random.PRNGKey(0)
    kx, kw, kb = jax.random.split(key, 3)

    x = jax.random.normal(kx, (B, C, L), dtype=jnp.float32)
    # Deterministic PyTorch-style init: U(-1/sqrt(C*K), 1/sqrt(C*K))
    bound = 1.0 / jnp.sqrt(jnp.float32(C * K))
    w = jax.random.uniform(kw, (O, C, K), jnp.float32, -bound, bound)
    b = jax.random.uniform(kb, (O,), jnp.float32, -bound, bound)

    # f32 path (tight tolerance).
    y = jax.block_until_ready(cnn_forward(x, w, b))
    y_ref = _reference(x, w, b)
    assert y.shape == (B, O * 3)
    assert jnp.allclose(y, y_ref, atol=1e-5, rtol=1e-5), "mismatch vs reference (f32)"

    # bf16-input path (recommended on v6e/v7x; f32 MXU accumulation), relaxed tol.
    y_bf = jax.block_until_ready(cnn_forward(x, w, b, use_bf16=True))
    assert jnp.allclose(y_bf, y_ref, atol=5e-2, rtol=5e-2), "mismatch vs reference (bf16)"

    # Non-multiple-of-8 batch exercises batch padding + multi-block grid (2 blocks).
    B2 = 40
    x2 = jax.random.normal(jax.random.PRNGKey(1), (B2, C, L), dtype=jnp.float32)
    y2 = jax.block_until_ready(cnn_forward(x2, w, b))
    y2_ref = _reference(x2, w, b)
    assert y2.shape == (B2, O * 3)
    assert jnp.allclose(y2, y2_ref, atol=1e-5, rtol=1e-5), "mismatch vs reference (B=40)"

    print("KERNEL_OK")
</pallas_src>

<mosaic_0001>
module attributes {stable_mosaic.version = 11 : i64} {
  func.func @_linreg_kernel(%arg0: i32, %arg1: memref<8x64xf32, #tpu.memory_space<vmem>>, %arg2: memref<64x128xf32, #tpu.memory_space<vmem>>, %arg3: memref<1x128xf32, #tpu.memory_space<vmem>>, %arg4: memref<8x128xf32, #tpu.memory_space<vmem>>) attributes {dimension_semantics = [#tpu.dimension_semantics<parallel>], iteration_bounds = array<i64: 1>, scalar_prefetch = 0 : i64, scratch_operands = 0 : i64, tpu.core_type = #tpu.core_type<tc>, window_params = [{transform_indices = @transform_0, window_bounds = array<i64: 8, 64>}, {pipeline_mode = #tpu.pipeline_mode<synchronous>, transform_indices = @transform_1, window_bounds = array<i64: 64, 128>}, {pipeline_mode = #tpu.pipeline_mode<synchronous>, transform_indices = @transform_2, window_bounds = array<i64: 1, 128>}, {transform_indices = @transform_3, window_bounds = array<i64: 8, 128>}]} {
    %c0 = arith.constant 0 : index
    %c0_0 = arith.constant 0 : index
    %0 = vector.load %arg1[%c0, %c0_0] : memref<8x64xf32, #tpu.memory_space<vmem>>, vector<8x64xf32>
    %c0_1 = arith.constant 0 : index
    %c0_2 = arith.constant 0 : index
    %1 = vector.load %arg2[%c0_1, %c0_2] : memref<64x128xf32, #tpu.memory_space<vmem>>, vector<64x128xf32>
    %cst = arith.constant dense<0.000000e+00> : vector<8x128xf32>
    %2 = tpu.matmul %0, %1, %cst {dimension_numbers = #tpu.dot_dimension_numbers<[1], [0], [0], [1], [0, 0, 1, 1], [], []>} : vector<8x64xf32>, vector<64x128xf32>, vector<8x128xf32> -> vector<8x128xf32>
    %c0_3 = arith.constant 0 : index
    %c0_4 = arith.constant 0 : index
    %3 = vector.load %arg3[%c0_3, %c0_4] : memref<1x128xf32, #tpu.memory_space<vmem>>, vector<1x128xf32>
    %4 = vector.broadcast %3 : vector<1x128xf32> to vector<8x128xf32>
    %5 = arith.addf %2, %4 : vector<8x128xf32>
    %c0_5 = arith.constant 0 : index
    %c0_6 = arith.constant 0 : index
    %6 = vector.load %arg4[%c0_5, %c0_6] : memref<8x128xf32, #tpu.memory_space<vmem>>, vector<8x128xf32>
    tpu.vector_store %arg4[%c0_5, %c0_6], %5 {strides = array<i32>} : memref<8x128xf32, #tpu.memory_space<vmem>>, vector<8x128xf32>,
    return
  }
  func.func @transform_0(%arg0: i32) -> (i32, i32) {
    %c0_i32 = arith.constant 0 : i32
    %c0_i32_0 = arith.constant 0 : i32
    return %arg0, %c0_i32 : i32, i32
  }
  func.func @transform_1(%arg0: i32) -> (i32, i32) {
    %c0_i32 = arith.constant 0 : i32
    %c0_i32_0 = arith.constant 0 : i32
    %c0_i32_1 = arith.constant 0 : i32
    return %c0_i32, %c0_i32_0 : i32, i32
  }
  func.func @transform_2(%arg0: i32) -> (i32, i32) {
    %c0_i32 = arith.constant 0 : i32
    %c0_i32_0 = arith.constant 0 : i32
    %c0_i32_1 = arith.constant 0 : i32
    return %c0_i32, %c0_i32_0 : i32, i32
  }
  func.func @transform_3(%arg0: i32) -> (i32, i32) {
    %c0_i32 = arith.constant 0 : i32
    %c0_i32_0 = arith.constant 0 : i32
    return %arg0, %c0_i32 : i32, i32
  }
}

</mosaic_0001>

<llo_original>
// kernel: tpu_custom_call.1
$region0: #{tpu_custom_call.1}
  #allocation0 [shape = 'u32[]', space=smem, size = 0x4, offset = 0x4, fixed_abs, tag = 'smem constant byte address 0x4 - core index']
  #allocation1 [shape = 'u32[144,128]{1,0:T(1,128)}', space=vmem, size = 0x12000, scoped, tag = 'internal scratch']
  %s0 = inlined_call_operand.hbm [shape: f32[8,64], index: 0, kind: input, shape index: {}]
  %s1 = inlined_call_operand.hbm [shape: f32[64,128], index: 1, kind: input, shape index: {}]
  %s2 = inlined_call_operand.vmem [shape: f32[1,128], index: 2, kind: input, shape index: {}]
  %s3 = inlined_call_operand.hbm [shape: f32[8,128], index: 3, kind: output, shape index: {}]
  %s4 = sld [smem:[#allocation0]]
  $region30: #{tpu_custom_call.1} parent=0
    _
  %s6 = ssub.s32 1, %s4
  %s7 = scalar_select 0, %s6, %s4
  $region1: #{tpu_custom_call.1} parent=0
    #allocation2 [shape = 'u8[4096]{0}', space=vmem, size = 0x1000, scoped, tag = 'input window, operand 0, single buffered']
    #allocation3 [shape = 's32[1]{0}', space=sflag, size = 0x4, scoped, tag = 'scoped memory for tpu_custom_call.1']
    #allocation4 [shape = 's32[1]{0}', space=sflag, size = 0x4, scoped, tag = 'scoped memory for tpu_custom_call.1']
    #allocation5 [shape = 'u8[32768]{0}', space=vmem, size = 0x8000, scoped, tag = 'input window, operand 1, single buffered']
    #allocation6 [shape = 's32[1]{0}', space=sflag, size = 0x4, scoped, tag = 'scoped memory for tpu_custom_call.1']
    #allocation7 [shape = 'u8[4096]{0}', space=vmem, size = 0x1000, scoped, tag = 'output window, operand 0, single buffered']
    %8 = vsyncpa [#allocation3], 0
    %9 = vsyncpa [#allocation6], 0
    %10 = vsyncpa [#allocation4], 0
    // Predicated region
    $region2: #{tpu_custom_call.1} parent=1 // pred_check
      _
    $region3: #{tpu_custom_call.1} parent=1 // pred_check_branch
      %12 = sbr.rel (0) target = $region5
    $region4: #{tpu_custom_call.1} parent=1 // pred_region
      %s14 = ssub.s32 128, 128
      %15 = vsyncadd [#allocation3], %s14
      %s17 = sshll.u32 [#allocation2], 4
      %s18 = int_to_ptr.vmem [resolvable:$true] %s17
      %20 = dma.hbm_to_vmem [thread:$0]  %s0, 128, %s18, [#allocation3]
    $region5: #{tpu_custom_call.1} parent=1 // pred_fallthru
      _
    // Predicated region
    $region6: #{tpu_custom_call.1} parent=1 // pred_check
      _
    $region7: #{tpu_custom_call.1} parent=1 // pred_check_branch
      %22 = sbr.rel (0) target = $region9
    $region8: #{tpu_custom_call.1} parent=1 // pred_region
      %s24 = ssub.s32 1024, 1024
      %25 = vsyncadd [#allocation6], %s24
      %s26 = sshll.u32 [#allocation5], 4
      %s27 = int_to_ptr.vmem [resolvable:$true] %s26
      %32 = dma.hbm_to_vmem [thread:$0]  %s1, 1024, %s27, [#allocation6], 128, 128, 8
    $region9: #{tpu_custom_call.1} parent=1 // pred_fallthru
      _
    // Predicated region
    $region10: #{tpu_custom_call.1} parent=1 // pred_check
      _
    $region11: #{tpu_custom_call.1} parent=1 // pred_check_branch
      %34 = sbr.rel (0) target = $region13
    $region12: #{tpu_custom_call.1} parent=1 // pred_region
      _
    $region13: #{tpu_custom_call.1} parent=1 // pred_fallthru
      _
    // Predicated region
    $region14: #{tpu_custom_call.1} parent=1 // pred_check
      _
    $region15: #{tpu_custom_call.1} parent=1 // pred_check_branch
      %36 = sbr.rel (0) target = $region17
    $region16: #{tpu_custom_call.1} parent=1 // pred_region
      %37 = dma.done [#allocation3], 128
    $region17: #{tpu_custom_call.1} parent=1 // pred_fallthru
      _
    // Predicated region
    $region18: #{tpu_custom_call.1} parent=1 // pred_check
      _
    $region19: #{tpu_custom_call.1} parent=1 // pred_check_branch
      %39 = sbr.rel (0) target = $region21
    $region20: #{tpu_custom_call.1} parent=1 // pred_region
      %40 = dma.done [#allocation6], 1024
    $region21: #{tpu_custom_call.1} parent=1 // pred_fallthru
      _
    %v41 = vld [vmem:[#allocation2] sm:$0xff]
    %v42 = vld [vmem:[#allocation5] sm:$0xff]
    %v43 = vld [vmem:[#allocation5 + $0x8] sm:$0xff]
    %v44 = vld [vmem:[#allocation5 + $0x10] sm:$0xff]
    %v45 = vld [vmem:[#allocation5 + $0x18] sm:$0xff]
    %v46 = vld [vmem:[#allocation5 + $0x20] sm:$0xff]
    %v47 = vld [vmem:[#allocation5 + $0x28] sm:$0xff]
    %v48 = vld [vmem:[#allocation5 + $0x30] sm:$0xff]
    %v49 = vld [vmem:[#allocation5 + $0x38] sm:$0xff]
    %v50 = vld [vmem:[%s2] sm:$0x1]
    %v52 = vlaneseq
    %v53 = vshrl.u32 %v52, 7
    %v54 = vsub.s32 0, %v53
    %v55 = vrot.slane %v50, %v54
    %vm57 = vcmask 523264
    %v59 = vsel %vm57, %v41, 0
    %61 = vmatprep.subr.mxu0 0.0
    %62 = vmatpush1.msra.mxu0 %v42
    %63 = vmatprep.subr.mxu0 0.0
    %64 = vmatpush1.msra.mxu0 %v43
    %65 = vmatprep.subr.mxu0 0.0
    %66 = vmatpush1.msra.mxu0 %v44
    %67 = vmatprep.subr.mxu0 0.0
    %68 = vmatpush1.msra.mxu0 %v45
    %69 = vmatprep.subr.mxu0 0.0
    %70 = vmatpush1.msra.mxu0 %v46
    %71 = vmatprep.subr.mxu0 0.0
    %72 = vmatpush1.msra.mxu0 %v47
    %73 = vmatprep.subr.mxu0 0.0
    %74 = vmatpush1.msra.mxu0 %v48
    %75 = vmatprep.subr.mxu0 0.0
    %76 = vmatpush1.msra.mxu0 %v49
    %77 = vmatprep.subr.mxu0 0.0
    %78 = vmatpush1.msra.mxu0 0.0
    %79 = vmatprep.subr.mxu0 0.0
    %80 = vmatpush1.msra.mxu0 0.0
    %81 = vmatprep.subr.mxu0 0.0
    %82 = vmatpush1.msra.mxu0 0.0
    %83 = vmatprep.subr.mxu0 0.0
    %84 = vmatpush1.msra.mxu0 0.0
    %85 = vmatprep.subr.mxu0 0.0
    %86 = vmatpush1.msra.mxu0 0.0
    %87 = vmatprep.subr.mxu0 0.0
    %88 = vmatpush1.msra.mxu0 0.0
    %89 = vmatprep.subr.mxu0 0.0
    %90 = vmatpush1.msra.mxu0 0.0
    %91 = vmatprep.subr.mxu0 0.0
    %92 = vmatpush1.msra.mxu0 0.0
    %93 = vmatprep.subr.mxu0 0.0
    %94 = vmatpush1.msra.mxu0 0.0
    %95 = vmatprep.subr.mxu0 0.0
    %96 = vmatpush1.msra.mxu0 0.0
    %97 = vmatprep.subr.mxu0 0.0
    %98 = vmatpush1.msra.mxu0 0.0
    %99 = vmatprep.subr.mxu0 0.0
    %100 = vmatpush1.msra.mxu0 0.0
    %101 = vmatprep.subr.mxu0 0.0
    %102 = vmatpush1.msra.mxu0 0.0
    %103 = vmatprep.subr.mxu0 0.0
    %104 = vmatpush1.msra.mxu0 0.0
    %105 = vmatprep.subr.mxu0 0.0
    %106 = vmatpush1.msra.mxu0 0.0
    %107 = vmatprep.subr.mxu0 0.0
    %108 = vmatpush1.msra.mxu0 0.0
    %109 = vmatprep.subr.mxu0 0.0
    %110 = vmatpush1.msra.mxu0 0.0
    %111 = vmatprep.subr.mxu0 0.0
    %112 = vmatpush1.msra.mxu0 0.0
    %113 = vmatprep.subr.mxu0 0.0
    %114 = vmatpush1.msra.mxu0 0.0
    %115 = vmatprep.subr.mxu0 0.0
    %116 = vmatpush1.msra.mxu0 0.0
    %117 = vmatprep.subr.mxu0 0.0
    %118 = vmatpush1.msra.mxu0 0.0
    %119 = vmatprep.subr.mxu0 0.0
    %120 = vmatpush1.msra.mxu0 0.0
    %121 = vmatprep.subr.mxu0 0.0
    %122 = vmatpush1.msra.mxu0 0.0
    %123 = vmatprep.subr.mxu0 0.0
    %124 = vmatpush1.msra.mxu0 0.0
    %125 = vmatprep.mubr.f32.mxu0 0.0
    %126 = vmatmul.mubr.f32.gmra.mrb[0].mxu0 %v59
    %v127 = vpop.f32.mrb[0].mxu0
    %v128 = vadd.f32 %v55, %v127
    %v129 = vpop.f32.mrb[0].mxu0
    %130 = vdwg.mxu0
    %131 = vst [vmem:[#allocation7] sm:$0xff] %v128
    // Predicated region
    $region22: #{tpu_custom_call.1} parent=1 // pred_check
      _
    $region23: #{tpu_custom_call.1} parent=1 // pred_check_branch
      %133 = sbr.rel (0) target = $region25
    $region24: #{tpu_custom_call.1} parent=1 // pred_region
      %s135 = ssub.s32 128, 128
      %136 = vsyncadd [#allocation4], %s135
      %s138 = sshll.u32 [#allocation7], 4
      %s139 = int_to_ptr.vmem [resolvable:$true] %s138
      %141 = dma.vmem_to_hbm [thread:$0]  %s139, 128, %s3, [#allocation4]
    $region25: #{tpu_custom_call.1} parent=1 // pred_fallthru
      _
    // Predicated region
    $region26: #{tpu_custom_call.1} parent=1 // pred_check
      _
    $region27: #{tpu_custom_call.1} parent=1 // pred_check_branch
      %143 = sbr.rel (0) target = $region29
    $region28: #{tpu_custom_call.1} parent=1 // pred_region
      %144 = dma.done [#allocation4], 128
    $region29: #{tpu_custom_call.1} parent=1 // pred_fallthru
      _
    %145 = vsyncpa [#allocation3], 1
    %146 = vsyncpa [#allocation6], 1
    %147 = vsyncpa [#allocation4], 1

</llo_original>
